<compile_context>
chip_gen: v7x
topology: tpu7x:2x2x1
jax: 0.10.0
libtpu: 0.0.40
codegen_flags: <defaults>
</compile_context>

<pallas_src>
import functools

import jax
import jax.numpy as jnp
from jax import lax
from jax.experimental import pallas as pl
from jax.experimental.pallas import tpu as pltpu


_LANES = 128
_TARGET_BLOCK_BYTES = 2 * 1024 * 1024   # per input, per block (x2 inputs x2 buffers ~ 8 MiB)
_SMALL_FALLBACK_ELEMS = 100_000         # below this a kernel launch is overhead-dominated


def _round_up(v, m):
    return (v + m - 1) // m * m


def _my_loss_kernel(x_ref, y_ref, o_ref, acc_ref, *,
                    rows_total, block_rows, neg_inv_n):
    # x_ref, y_ref : (BT, TR, L) VMEM tiles in the native input dtype
    # o_ref        : (BT, 1)     output tile (promoted input dtype)
    # acc_ref      : (BT, 8, L)  f32 accumulator, resident across the r axis
    r = pl.program_id(1)
    last = pl.num_programs(1) - 1

    @pl.when(r == 0)
    def _init():
        acc_ref[...] = jnp.zeros_like(acc_ref)

    def _accumulate(mask_rows):
        x = x_ref[...].astype(jnp.float32)   # in-kernel upcast only (no wrapper cast)
        y = y_ref[...].astype(jnp.float32)
        prod = x * y
        if mask_rows:
            # ragged tail: zero out-of-range rows BEFORE they reach the accumulator
            rows_left = rows_total - r * block_rows
            row_ids = lax.broadcasted_iota(jnp.int32, prod.shape, 1)
            prod = jnp.where(row_ids < rows_left, prod, 0.0)
        bt, tr, l = prod.shape
        # pure-VPU partial sums (8-row groups align with vreg sublane tiles);
        # no XLU work in the hot loop.
        acc_ref[...] += jnp.sum(prod.reshape(bt, tr // 8, 8, l), axis=1)

    if rows_total % block_rows == 0:
        _accumulate(mask_rows=False)         # no ragged tail exists at all
    else:
        @pl.when(r == last)
        def _ragged_step():
            _accumulate(mask_rows=True)

        @pl.when(r != last)
        def _full_step():
            _accumulate(mask_rows=False)

    @pl.when(r == last)
    def _finalize():
        # one sublane reduce + one lane reduce per batch block, then fold the
        # -1 (from y = -y) and the 1/N mean into a single scale
        part = jnp.sum(acc_ref[...], axis=1)             # (BT, L)
        total = jnp.sum(part, axis=-1, keepdims=True)    # (BT, 1)
        o_ref[...] = (total * neg_inv_n).astype(o_ref.dtype)


def my_loss(x, y):
    """JAX/Pallas equivalent of My_loss.forward(x, y) for (B, N, D) inputs."""
    B, N, D = x.shape
    assert y.shape == (B, N, D)
    out_dtype = jnp.result_type(x.dtype, y.dtype)
    nd = N * D

    # ---- tiny problems: a couple of fused XLA ops beat a kernel launch -----
    if B * nd <= _SMALL_FALLBACK_ELEMS:
        z = jnp.sum(x.astype(jnp.float32) * y.astype(jnp.float32), axis=-1)
        return (-jnp.mean(z, axis=-1)).astype(out_dtype)

    # ---- zero-copy lane-dense layout (never jnp.pad) ------------------------
    if nd % _LANES == 0:
        rows, lanes = nd // _LANES, _LANES          # flat (B, R, 128) view: free reshape
        x3 = x.reshape(B, rows, lanes)
        y3 = y.reshape(B, rows, lanes)
    else:
        rows, lanes = N, D                          # ragged N*D: keep natural (B, N, D)
        x3, y3 = x, y

    itemsize = max(jnp.dtype(x.dtype).itemsize, jnp.dtype(y.dtype).itemsize)
    vmem_row_bytes = _round_up(lanes, _LANES) * itemsize

    max_rows = max(8, (_TARGET_BLOCK_BYTES // vmem_row_bytes) // 8 * 8)
    tr = min(_round_up(rows, 8), max_rows)          # rows per reduction step (mult of 8)
    r_steps = pl.cdiv(rows, tr)

    bt = max(1, min(B, _TARGET_BLOCK_BYTES // (tr * vmem_row_bytes)))
    while B % bt:                                   # dense batch blocks, no OOB batch rows
        bt -= 1
    b_steps = B // bt

    kernel = functools.partial(
        _my_loss_kernel,
        rows_total=rows, block_rows=tr, neg_inv_n=-1.0 / float(N))

    cost = pl.CostEstimate(
        flops=2 * B * nd,
        transcendentals=0,
        bytes_accessed=B * nd * (jnp.dtype(x.dtype).itemsize
                                 + jnp.dtype(y.dtype).itemsize)
                       + B * jnp.dtype(out_dtype).itemsize,
    )

    out = pl.pallas_call(
        kernel,
        out_shape=jax.ShapeDtypeStruct((B, 1), out_dtype),
        grid_spec=pltpu.PrefetchScalarGridSpec(
            num_scalar_prefetch=0,
            grid=(b_steps, r_steps),
            in_specs=[
                pl.BlockSpec((bt, tr, lanes), lambda b, r: (b, r, 0)),
                pl.BlockSpec((bt, tr, lanes), lambda b, r: (b, r, 0)),
            ],
            out_specs=pl.BlockSpec((bt, 1), lambda b, r: (b, 0)),
            scratch_shapes=[pltpu.VMEM((bt, 8, lanes), jnp.float32)],
        ),
        compiler_params=pltpu.CompilerParams(
            dimension_semantics=("parallel", "arbitrary"),
        ),
        cost_estimate=cost,
    )(x3, y3)
    return out[:, 0]


if __name__ == "__main__":
    key = jax.random.PRNGKey(0)

    def reference(x, y):
        z = jnp.sum(x.astype(jnp.float32) * (-y.astype(jnp.float32)), axis=-1)
        return jnp.mean(z, axis=-1)

    cases = [
        (2, 8, 32),        # module-implied small shape (jnp fast path)
        (4, 384, 96),      # lane-dense flat path, batch-blocked, single r-step
        (1, 40000, 128),   # flat path, multi-step reduction with masked tail
        (8, 555, 33),      # N*D % 128 != 0: natural layout, masked N tail, 2 batch blocks
    ]
    for (B, N, D) in cases:
        key, kx, ky = jax.random.split(key, 3)
        x = jax.random.normal(kx, (B, N, D), dtype=jnp.float32)
        y = jax.random.normal(ky, (B, N, D), dtype=jnp.float32)

        z = my_loss(x, y)
        jax.block_until_ready(z)

        z_ref = reference(x, y)
        assert z.shape == (B,), (z.shape, B)
        assert jnp.allclose(z, z_ref, atol=1e-4, rtol=1e-3), (B, N, D, z, z_ref)

    print("KERNEL_OK")
</pallas_src>

<mosaic_0001>
module attributes {stable_mosaic.version = 11 : i64} {
  func.func @_my_loss_kernel(%arg0: i32, %arg1: i32, %arg2: memref<4x288x128xf32, #tpu.memory_space<vmem>>, %arg3: memref<4x288x128xf32, #tpu.memory_space<vmem>>, %arg4: memref<4x1xf32, #tpu.memory_space<vmem>>, %arg5: memref<4x8x128xf32, #tpu.memory_space<vmem>>) attributes {dimension_semantics = [#tpu.dimension_semantics<parallel>, #tpu.dimension_semantics<arbitrary>], iteration_bounds = array<i64: 1, 1>, scalar_prefetch = 0 : i64, scratch_operands = 1 : i64, tpu.core_type = #tpu.core_type<tc>, window_params = [{transform_indices = @transform_0, window_bounds = array<i64: 4, 288, 128>}, {transform_indices = @transform_1, window_bounds = array<i64: 4, 288, 128>}, {transform_indices = @transform_2, window_bounds = array<i64: 4, 1>}]} {
    %c0_i32 = arith.constant 0 : i32
    %0 = arith.cmpi eq, %arg1, %c0_i32 : i32
    %1 = arith.extui %0 : i1 to i32
    %c0_i32_0 = arith.constant 0 : i32
    %2 = arith.cmpi ne, %1, %c0_i32_0 : i32
    scf.if %2 {
      %cst_14 = arith.constant 0.000000e+00 : f32
      %14 = vector.broadcast %cst_14 : f32 to vector<4x8x128xf32>
      %c0_15 = arith.constant 0 : index
      %c0_16 = arith.constant 0 : index
      %c0_17 = arith.constant 0 : index
      %15 = vector.load %arg5[%c0_15, %c0_16, %c0_17] : memref<4x8x128xf32, #tpu.memory_space<vmem>>, vector<4x8x128xf32>
      tpu.vector_store %arg5[%c0_15, %c0_16, %c0_17], %14 {strides = array<i32>} : memref<4x8x128xf32, #tpu.memory_space<vmem>>, vector<4x8x128xf32>,
    } else {
    }
    %c0 = arith.constant 0 : index
    %c0_1 = arith.constant 0 : index
    %c0_2 = arith.constant 0 : index
    %3 = vector.load %arg2[%c0, %c0_1, %c0_2] : memref<4x288x128xf32, #tpu.memory_space<vmem>>, vector<4x288x128xf32>
    %c0_3 = arith.constant 0 : index
    %c0_4 = arith.constant 0 : index
    %c0_5 = arith.constant 0 : index
    %4 = vector.load %arg3[%c0_3, %c0_4, %c0_5] : memref<4x288x128xf32, #tpu.memory_space<vmem>>, vector<4x288x128xf32>
    %5 = arith.mulf %3, %4 : vector<4x288x128xf32>
    %c0_6 = arith.constant 0 : index
    %c0_7 = arith.constant 0 : index
    %c0_8 = arith.constant 0 : index
    %6 = vector.load %arg5[%c0_6, %c0_7, %c0_8] : memref<4x8x128xf32, #tpu.memory_space<vmem>>, vector<4x8x128xf32>
    %7 = vector.shape_cast %5 : vector<4x288x128xf32> to vector<4x36x8x128xf32>
    %cst = arith.constant dense<0.000000e+00> : vector<4x8x128xf32>
    %8 = vector.multi_reduction <add>, %7, %cst [1] : vector<4x36x8x128xf32> to vector<4x8x128xf32>
    %9 = arith.addf %6, %8 : vector<4x8x128xf32>
    %c0_9 = arith.constant 0 : index
    %c0_10 = arith.constant 0 : index
    %c0_11 = arith.constant 0 : index
    %10 = vector.load %arg5[%c0_9, %c0_10, %c0_11] : memref<4x8x128xf32, #tpu.memory_space<vmem>>, vector<4x8x128xf32>
    tpu.vector_store %arg5[%c0_9, %c0_10, %c0_11], %9 {strides = array<i32>} : memref<4x8x128xf32, #tpu.memory_space<vmem>>, vector<4x8x128xf32>,
    %c0_i32_12 = arith.constant 0 : i32
    %11 = arith.cmpi eq, %arg1, %c0_i32_12 : i32
    %12 = arith.extui %11 : i1 to i32
    %c0_i32_13 = arith.constant 0 : i32
    %13 = arith.cmpi ne, %12, %c0_i32_13 : i32
    scf.if %13 {
      %c0_14 = arith.constant 0 : index
      %c0_15 = arith.constant 0 : index
      %c0_16 = arith.constant 0 : index
      %14 = vector.load %arg5[%c0_14, %c0_15, %c0_16] : memref<4x8x128xf32, #tpu.memory_space<vmem>>, vector<4x8x128xf32>
      %cst_17 = arith.constant dense<0.000000e+00> : vector<4x128xf32>
      %15 = vector.multi_reduction <add>, %14, %cst_17 [1] : vector<4x8x128xf32> to vector<4x128xf32>
      %cst_18 = arith.constant dense<0.000000e+00> : vector<4xf32>
      %16 = vector.multi_reduction <add>, %15, %cst_18 [1] : vector<4x128xf32> to vector<4xf32>
      %17 = vector.shape_cast %16 : vector<4xf32> to vector<4x1xf32>
      %cst_19 = arith.constant -0.00260416674 : f32
      %18 = vector.broadcast %cst_19 : f32 to vector<4x1xf32>
      %19 = arith.mulf %17, %18 : vector<4x1xf32>
      %c0_20 = arith.constant 0 : index
      %c0_21 = arith.constant 0 : index
      %20 = vector.load %arg4[%c0_20, %c0_21] : memref<4x1xf32, #tpu.memory_space<vmem>>, vector<4x1xf32>
      tpu.vector_store %arg4[%c0_20, %c0_21], %19 {strides = array<i32>} : memref<4x1xf32, #tpu.memory_space<vmem>>, vector<4x1xf32>,
    } else {
    }
    return
  }
  func.func @transform_0(%arg0: i32, %arg1: i32) -> (i32, i32, i32) {
    %c0_i32 = arith.constant 0 : i32
    %c0_i32_0 = arith.constant 0 : i32
    return %arg0, %arg1, %c0_i32 : i32, i32, i32
  }
  func.func @transform_1(%arg0: i32, %arg1: i32) -> (i32, i32, i32) {
    %c0_i32 = arith.constant 0 : i32
    %c0_i32_0 = arith.constant 0 : i32
    return %arg0, %arg1, %c0_i32 : i32, i32, i32
  }
  func.func @transform_2(%arg0: i32, %arg1: i32) -> (i32, i32) {
    %c0_i32 = arith.constant 0 : i32
    %c0_i32_0 = arith.constant 0 : i32
    return %arg0, %c0_i32 : i32, i32
  }
}

</mosaic_0001>

<llo_original>
// kernel: tpu_custom_call.1
$region0: #{tpu_custom_call.1}
  #allocation0 [shape = 'u32[]', space=smem, size = 0x4, offset = 0x4, fixed_abs, tag = 'smem constant byte address 0x4 - core index']
  #allocation1 [shape = 'u32[144,128]{1,0:T(1,128)}', space=vmem, size = 0x12000, scoped, tag = 'internal scratch']
  #allocation2 [shape = 'f32[4,8,128]{2,1,0:T(8,128)}', space=vmem, size = 0x4000, scoped, tag = 'scratch operand']
  %s0 = inlined_call_operand.hbm [shape: f32[4,288,128], index: 0, kind: input, shape index: {}]
  %s1 = inlined_call_operand.hbm [shape: f32[4,288,128], index: 1, kind: input, shape index: {}]
  %s2 = inlined_call_operand.vmem [shape: f32[4,1], index: 2, kind: output, shape index: {}]
  %s3 = sld [smem:[#allocation0]]
  $region34: #{tpu_custom_call.1} parent=0
    _
  %s5 = ssub.s32 1, %s3
  %s6 = scalar_select 0, %s5, %s3
  $region1: #{tpu_custom_call.1} parent=0
    #allocation3 [shape = 'u8[589824]{0}', space=vmem, size = 0x90000, scoped, tag = 'input window, operand 0, single buffered']
    #allocation4 [shape = 's32[1]{0}', space=sflag, size = 0x4, scoped, tag = 'scoped memory for tpu_custom_call.1']
    #allocation5 [shape = 'u8[589824]{0}', space=vmem, size = 0x90000, scoped, tag = 'input window, operand 1, single buffered']
    #allocation6 [shape = 's32[1]{0}', space=sflag, size = 0x4, scoped, tag = 'scoped memory for tpu_custom_call.1']
    %7 = vsyncpa [#allocation4], 0
    %8 = vsyncpa [#allocation6], 0
    // Predicated region
    $region2: #{tpu_custom_call.1} parent=1 // pred_check
      _
    $region3: #{tpu_custom_call.1} parent=1 // pred_check_branch
      %10 = sbr.rel (0) target = $region5
    $region4: #{tpu_custom_call.1} parent=1 // pred_region
      %s12 = ssub.s32 18432, 18432
      %13 = vsyncadd [#allocation4], %s12
      %s14 = sshll.u32 [#allocation3], 4
      %s15 = int_to_ptr.vmem [resolvable:$true] %s14
      %20 = dma.hbm_to_vmem [thread:$0]  %s0, 18432, %s15, [#allocation4], 128, 128, 8
    $region5: #{tpu_custom_call.1} parent=1 // pred_fallthru
      _
    // Predicated region
    $region6: #{tpu_custom_call.1} parent=1 // pred_check
      _
    $region7: #{tpu_custom_call.1} parent=1 // pred_check_branch
      %22 = sbr.rel (0) target = $region9
    $region8: #{tpu_custom_call.1} parent=1 // pred_region
      %s24 = ssub.s32 18432, 18432
      %25 = vsyncadd [#allocation6], %s24
      %s26 = sshll.u32 [#allocation5], 4
      %s27 = int_to_ptr.vmem [resolvable:$true] %s26
      %32 = dma.hbm_to_vmem [thread:$0]  %s1, 18432, %s27, [#allocation6], 128, 128, 8
    $region9: #{tpu_custom_call.1} parent=1 // pred_fallthru
      _
    // Predicated region
    $region10: #{tpu_custom_call.1} parent=1 // pred_check
      _
    $region11: #{tpu_custom_call.1} parent=1 // pred_check_branch
      %34 = sbr.rel (0) target = $region13
    $region12: #{tpu_custom_call.1} parent=1 // pred_region
      %35 = dma.done [#allocation4], 18432
    $region13: #{tpu_custom_call.1} parent=1 // pred_fallthru
      _
    // Predicated region
    $region14: #{tpu_custom_call.1} parent=1 // pred_check
      _
    $region15: #{tpu_custom_call.1} parent=1 // pred_check_branch
      %37 = sbr.rel (0) target = $region17
    $region16: #{tpu_custom_call.1} parent=1 // pred_region
      %38 = dma.done [#allocation6], 18432
    $region17: #{tpu_custom_call.1} parent=1 // pred_fallthru
      _
    %p39 = scmp.eq.s32.totalorder 0, 0
    // Predicated region
    $region18: #{tpu_custom_call.1} parent=1 // pred_check
      %p40 = pneg %p39
    $region19: #{tpu_custom_call.1} parent=1 // pred_check_branch
      %42 = sbr.rel (%p40) target = $region21
    $region20: #{tpu_custom_call.1} parent=1 // pred_region
      %43 = vst [vmem:[#allocation2] sm:$0xff] 0.0
      %44 = vst [vmem:[#allocation2 + $0x8] sm:$0xff] 0.0
      %45 = vst [vmem:[#allocation2 + $0x10] sm:$0xff] 0.0
      %46 = vst [vmem:[#allocation2 + $0x18] sm:$0xff] 0.0
    $region21: #{tpu_custom_call.1} parent=1 // pred_fallthru
      _
    %v47 = vld [vmem:[#allocation3] sm:$0xff]
    %v48 = vld [vmem:[#allocation3 + $0x8] sm:$0xff]
    %v49 = vld [vmem:[#allocation3 + $0x10] sm:$0xff]
    %v50 = vld [vmem:[#allocation3 + $0x18] sm:$0xff]
    %v51 = vld [vmem:[#allocation3 + $0x20] sm:$0xff]
    %v52 = vld [vmem:[#allocation3 + $0x28] sm:$0xff]
    %v53 = vld [vmem:[#allocation3 + $0x30] sm:$0xff]
    %v54 = vld [vmem:[#allocation3 + $0x38] sm:$0xff]
    %v55 = vld [vmem:[#allocation3 + $0x40] sm:$0xff]
    %v56 = vld [vmem:[#allocation3 + $0x48] sm:$0xff]
    %v57 = vld [vmem:[#allocation3 + $0x50] sm:$0xff]
    %v58 = vld [vmem:[#allocation3 + $0x58] sm:$0xff]
    %v59 = vld [vmem:[#allocation3 + $0x60] sm:$0xff]
    %v60 = vld [vmem:[#allocation3 + $0x68] sm:$0xff]
    %v61 = vld [vmem:[#allocation3 + $0x70] sm:$0xff]
    %v62 = vld [vmem:[#allocation3 + $0x78] sm:$0xff]
    %v63 = vld [vmem:[#allocation3 + $0x80] sm:$0xff]
    %v64 = vld [vmem:[#allocation3 + $0x88] sm:$0xff]
    %v65 = vld [vmem:[#allocation3 + $0x90] sm:$0xff]
    %v66 = vld [vmem:[#allocation3 + $0x98] sm:$0xff]
    %v67 = vld [vmem:[#allocation3 + $0xa0] sm:$0xff]
    %v68 = vld [vmem:[#allocation3 + $0xa8] sm:$0xff]
    %v69 = vld [vmem:[#allocation3 + $0xb0] sm:$0xff]
    %v70 = vld [vmem:[#allocation3 + $0xb8] sm:$0xff]
    %v71 = vld [vmem:[#allocation3 + $0xc0] sm:$0xff]
    %v72 = vld [vmem:[#allocation3 + $0xc8] sm:$0xff]
    %v73 = vld [vmem:[#allocation3 + $0xd0] sm:$0xff]
    %v74 = vld [vmem:[#allocation3 + $0xd8] sm:$0xff]
    %v75 = vld [vmem:[#allocation3 + $0xe0] sm:$0xff]
    %v76 = vld [vmem:[#allocation3 + $0xe8] sm:$0xff]
    %v77 = vld [vmem:[#allocation3 + $0xf0] sm:$0xff]
    %v78 = vld [vmem:[#allocation3 + $0xf8] sm:$0xff]
    %v79 = vld [vmem:[#allocation3 + $0x100] sm:$0xff]
    %v80 = vld [vmem:[#allocation3 + $0x108] sm:$0xff]
    %v81 = vld [vmem:[#allocation3 + $0x110] sm:$0xff]
    %v82 = vld [vmem:[#allocation3 + $0x118] sm:$0xff]
    %v83 = vld [vmem:[#allocation3 + $0x120] sm:$0xff]
    %v84 = vld [vmem:[#allocation3 + $0x128] sm:$0xff]
    %v85 = vld [vmem:[#allocation3 + $0x130] sm:$0xff]
    %v86 = vld [vmem:[#allocation3 + $0x138] sm:$0xff]
    %v87 = vld [vmem:[#allocation3 + $0x140] sm:$0xff]
    %v88 = vld [vmem:[#allocation3 + $0x148] sm:$0xff]
    %v89 = vld [vmem:[#allocation3 + $0x150] sm:$0xff]
    %v90 = vld [vmem:[#allocation3 + $0x158] sm:$0xff]
    %v91 = vld [vmem:[#allocation3 + $0x160] sm:$0xff]
    %v92 = vld [vmem:[#allocation3 + $0x168] sm:$0xff]
    %v93 = vld [vmem:[#allocation3 + $0x170] sm:$0xff]
    %v94 = vld [vmem:[#allocation3 + $0x178] sm:$0xff]
    %v95 = vld [vmem:[#allocation3 + $0x180] sm:$0xff]
    %v96 = vld [vmem:[#allocation3 + $0x188] sm:$0xff]
    %v97 = vld [vmem:[#allocation3 + $0x190] sm:$0xff]
    %v98 = vld [vmem:[#allocation3 + $0x198] sm:$0xff]
    %v99 = vld [vmem:[#allocation3 + $0x1a0] sm:$0xff]
    %v100 = vld [vmem:[#allocation3 + $0x1a8] sm:$0xff]
    %v101 = vld [vmem:[#allocation3 + $0x1b0] sm:$0xff]
    %v102 = vld [vmem:[#allocation3 + $0x1b8] sm:$0xff]
    %v103 = vld [vmem:[#allocation3 + $0x1c0] sm:$0xff]
    %v104 = vld [vmem:[#allocation3 + $0x1c8] sm:$0xff]
    %v105 = vld [vmem:[#allocation3 + $0x1d0] sm:$0xff]
    %v106 = vld [vmem:[#allocation3 + $0x1d8] sm:$0xff]
    %v107 = vld [vmem:[#allocation3 + $0x1e0] sm:$0xff]
    %v108 = vld [vmem:[#allocation3 + $0x1e8] sm:$0xff]
    %v109 = vld [vmem:[#allocation3 + $0x1f0] sm:$0xff]
    %v110 = vld [vmem:[#allocation3 + $0x1f8] sm:$0xff]
    %v111 = vld [vmem:[#allocation3 + $0x200] sm:$0xff]
    %v112 = vld [vmem:[#allocation3 + $0x208] sm:$0xff]
    %v113 = vld [vmem:[#allocation3 + $0x210] sm:$0xff]
    %v114 = vld [vmem:[#allocation3 + $0x218] sm:$0xff]
    %v115 = vld [vmem:[#allocation3 + $0x220] sm:$0xff]
    %v116 = vld [vmem:[#allocation3 + $0x228] sm:$0xff]
    %v117 = vld [vmem:[#allocation3 + $0x230] sm:$0xff]
    %v118 = vld [vmem:[#allocation3 + $0x238] sm:$0xff]
    %v119 = vld [vmem:[#allocation3 + $0x240] sm:$0xff]
    %v120 = vld [vmem:[#allocation3 + $0x248] sm:$0xff]
    %v121 = vld [vmem:[#allocation3 + $0x250] sm:$0xff]
    %v122 = vld [vmem:[#allocation3 + $0x258] sm:$0xff]
    %v123 = vld [vmem:[#allocation3 + $0x260] sm:$0xff]
    %v124 = vld [vmem:[#allocation3 + $0x268] sm:$0xff]
    %v125 = vld [vmem:[#allocation3 + $0x270] sm:$0xff]
    %v126 = vld [vmem:[#allocation3 + $0x278] sm:$0xff]
    %v127 = vld [vmem:[#allocation3 + $0x280] sm:$0xff]
    %v128 = vld [vmem:[#allocation3 + $0x288] sm:$0xff]
    %v129 = vld [vmem:[#allocation3 + $0x290] sm:$0xff]
    %v130 = vld [vmem:[#allocation3 + $0x298] sm:$0xff]
    %v131 = vld [vmem:[#allocation3 + $0x2a0] sm:$0xff]
    %v132 = vld [vmem:[#allocation3 + $0x2a8] sm:$0xff]
    %v133 = vld [vmem:[#allocation3 + $0x2b0] sm:$0xff]
    %v134 = vld [vmem:[#allocation3 + $0x2b8] sm:$0xff]
    %v135 = vld [vmem:[#allocation3 + $0x2c0] sm:$0xff]
    %v136 = vld [vmem:[#allocation3 + $0x2c8] sm:$0xff]
    %v137 = vld [vmem:[#allocation3 + $0x2d0] sm:$0xff]
    %v138 = vld [vmem:[#allocation3 + $0x2d8] sm:$0xff]
    %v139 = vld [vmem:[#allocation3 + $0x2e0] sm:$0xff]
    %v140 = vld [vmem:[#allocation3 + $0x2e8] sm:$0xff]
    %v141 = vld [vmem:[#allocation3 + $0x2f0] sm:$0xff]
    %v142 = vld [vmem:[#allocation3 + $0x2f8] sm:$0xff]
    %v143 = vld [vmem:[#allocation3 + $0x300] sm:$0xff]
    %v144 = vld [vmem:[#allocation3 + $0x308] sm:$0xff]
    %v145 = vld [vmem:[#allocation3 + $0x310] sm:$0xff]
    %v146 = vld [vmem:[#allocation3 + $0x318] sm:$0xff]
    %v147 = vld [vmem:[#allocation3 + $0x320] sm:$0xff]
    %v148 = vld [vmem:[#allocation3 + $0x328] sm:$0xff]
    %v149 = vld [vmem:[#allocation3 + $0x330] sm:$0xff]
    %v150 = vld [vmem:[#allocation3 + $0x338] sm:$0xff]
    %v151 = vld [vmem:[#allocation3 + $0x340] sm:$0xff]
    %v152 = vld [vmem:[#allocation3 + $0x348] sm:$0xff]
    %v153 = vld [vmem:[#allocation3 + $0x350] sm:$0xff]
    %v154 = vld [vmem:[#allocation3 + $0x358] sm:$0xff]
    %v155 = vld [vmem:[#allocation3 + $0x360] sm:$0xff]
    %v156 = vld [vmem:[#allocation3 + $0x368] sm:$0xff]
    %v157 = vld [vmem:[#allocation3 + $0x370] sm:$0xff]
    %v158 = vld [vmem:[#allocation3 + $0x378] sm:$0xff]
    %v159 = vld [vmem:[#allocation3 + $0x380] sm:$0xff]
    %v160 = vld [vmem:[#allocation3 + $0x388] sm:$0xff]
    %v161 = vld [vmem:[#allocation3 + $0x390] sm:$0xff]
    %v162 = vld [vmem:[#allocation3 + $0x398] sm:$0xff]
    %v163 = vld [vmem:[#allocation3 + $0x3a0] sm:$0xff]
    %v164 = vld [vmem:[#allocation3 + $0x3a8] sm:$0xff]
    %v165 = vld [vmem:[#allocation3 + $0x3b0] sm:$0xff]
    %v166 = vld [vmem:[#allocation3 + $0x3b8] sm:$0xff]
    %v167 = vld [vmem:[#allocation3 + $0x3c0] sm:$0xff]
    %v168 = vld [vmem:[#allocation3 + $0x3c8] sm:$0xff]
    %v169 = vld [vmem:[#allocation3 + $0x3d0] sm:$0xff]
    %v170 = vld [vmem:[#allocation3 + $0x3d8] sm:$0xff]
    %v171 = vld [vmem:[#allocation3 + $0x3e0] sm:$0xff]
    %v172 = vld [vmem:[#allocation3 + $0x3e8] sm:$0xff]
    %v173 = vld [vmem:[#allocation3 + $0x3f0] sm:$0xff]
    %v174 = vld [vmem:[#allocation3 + $0x3f8] sm:$0xff]
    %v175 = vld [vmem:[#allocation3 + $0x400] sm:$0xff]
    %v176 = vld [vmem:[#allocation3 + $0x408] sm:$0xff]
    %v177 = vld [vmem:[#allocation3 + $0x410] sm:$0xff]
    %v178 = vld [vmem:[#allocation3 + $0x418] sm:$0xff]
    %v179 = vld [vmem:[#allocation3 + $0x420] sm:$0xff]
    %v180 = vld [vmem:[#allocation3 + $0x428] sm:$0xff]
    %v181 = vld [vmem:[#allocation3 + $0x430] sm:$0xff]
    %v182 = vld [vmem:[#allocation3 + $0x438] sm:$0xff]
    %v183 = vld [vmem:[#allocation3 + $0x440] sm:$0xff]
    %v184 = vld [vmem:[#allocation3 + $0x448] sm:$0xff]
    %v185 = vld [vmem:[#allocation3 + $0x450] sm:$0xff]
    %v186 = vld [vmem:[#allocation3 + $0x458] sm:$0xff]
    %v187 = vld [vmem:[#allocation3 + $0x460] sm:$0xff]
    %v188 = vld [vmem:[#allocation3 + $0x468] sm:$0xff]
    %v189 = vld [vmem:[#allocation3 + $0x470] sm:$0xff]
    %v190 = vld [vmem:[#allocation3 + $0x478] sm:$0xff]
    %v191 = vld [vmem:[#allocation5] sm:$0xff]
    %v192 = vld [vmem:[#allocation5 + $0x8] sm:$0xff]
    %v193 = vld [vmem:[#allocation5 + $0x10] sm:$0xff]
    %v194 = vld [vmem:[#allocation5 + $0x18] sm:$0xff]
    %v195 = vld [vmem:[#allocation5 + $0x20] sm:$0xff]
    %v196 = vld [vmem:[#allocation5 + $0x28] sm:$0xff]
    %v197 = vld [vmem:[#allocation5 + $0x30] sm:$0xff]
    %v198 = vld [vmem:[#allocation5 + $0x38] sm:$0xff]
    %v199 = vld [vmem:[#allocation5 + $0x40] sm:$0xff]
    %v200 = vld [vmem:[#allocation5 + $0x48] sm:$0xff]
    %v201 = vld [vmem:[#allocation5 + $0x50] sm:$0xff]
    %v202 = vld [vmem:[#allocation5 + $0x58] sm:$0xff]
    %v203 = vld [vmem:[#allocation5 + $0x60] sm:$0xff]
    %v204 = vld [vmem:[#allocation5 + $0x68] sm:$0xff]
    %v205 = vld [vmem:[#allocation5 + $0x70] sm:$0xff]
    %v206 = vld [vmem:[#allocation5 + $0x78] sm:$0xff]
    %v207 = vld [vmem:[#allocation5 + $0x80] sm:$0xff]
    %v208 = vld [vmem:[#allocation5 + $0x88] sm:$0xff]
    %v209 = vld [vmem:[#allocation5 + $0x90] sm:$0xff]
    %v210 = vld [vmem:[#allocation5 + $0x98] sm:$0xff]
    %v211 = vld [vmem:[#allocation5 + $0xa0] sm:$0xff]
    %v212 = vld [vmem:[#allocation5 + $0xa8] sm:$0xff]
    %v213 = vld [vmem:[#allocation5 + $0xb0] sm:$0xff]
    %v214 = vld [vmem:[#allocation5 + $0xb8] sm:$0xff]
    %v215 = vld [vmem:[#allocation5 + $0xc0] sm:$0xff]
    %v216 = vld [vmem:[#allocation5 + $0xc8] sm:$0xff]
    %v217 = vld [vmem:[#allocation5 + $0xd0] sm:$0xff]
    %v218 = vld [vmem:[#allocation5 + $0xd8] sm:$0xff]
    %v219 = vld [vmem:[#allocation5 + $0xe0] sm:$0xff]
    %v220 = vld [vmem:[#allocation5 + $0xe8] sm:$0xff]
    %v221 = vld [vmem:[#allocation5 + $0xf0] sm:$0xff]
    %v222 = vld [vmem:[#allocation5 + $0xf8] sm:$0xff]
    %v223 = vld [vmem:[#allocation5 + $0x100] sm:$0xff]
    %v224 = vld [vmem:[#allocation5 + $0x108] sm:$0xff]
    %v225 = vld [vmem:[#allocation5 + $0x110] sm:$0xff]
    %v226 = vld [vmem:[#allocation5 + $0x118] sm:$0xff]
    %v227 = vld [vmem:[#allocation5 + $0x120] sm:$0xff]
    %v228 = vld [vmem:[#allocation5 + $0x128] sm:$0xff]
    %v229 = vld [vmem:[#allocation5 + $0x130] sm:$0xff]
    %v230 = vld [vmem:[#allocation5 + $0x138] sm:$0xff]
    %v231 = vld [vmem:[#allocation5 + $0x140] sm:$0xff]
    %v232 = vld [vmem:[#allocation5 + $0x148] sm:$0xff]
    %v233 = vld [vmem:[#allocation5 + $0x150] sm:$0xff]
    %v234 = vld [vmem:[#allocation5 + $0x158] sm:$0xff]
    %v235 = vld [vmem:[#allocation5 + $0x160] sm:$0xff]
    %v236 = vld [vmem:[#allocation5 + $0x168] sm:$0xff]
    %v237 = vld [vmem:[#allocation5 + $0x170] sm:$0xff]
    %v238 = vld [vmem:[#allocation5 + $0x178] sm:$0xff]
    %v239 = vld [vmem:[#allocation5 + $0x180] sm:$0xff]
    %v240 = vld [vmem:[#allocation5 + $0x188] sm:$0xff]
    %v241 = vld [vmem:[#allocation5 + $0x190] sm:$0xff]
    %v242 = vld [vmem:[#allocation5 + $0x198] sm:$0xff]
    %v243 = vld [vmem:[#allocation5 + $0x1a0] sm:$0xff]
    %v244 = vld [vmem:[#allocation5 + $0x1a8] sm:$0xff]
    %v245 = vld [vmem:[#allocation5 + $0x1b0] sm:$0xff]
    %v246 = vld [vmem:[#allocation5 + $0x1b8] sm:$0xff]
    %v247 = vld [vmem:[#allocation5 + $0x1c0] sm:$0xff]
    %v248 = vld [vmem:[#allocation5 + $0x1c8] sm:$0xff]
    %v249 = vld [vmem:[#allocation5 + $0x1d0] sm:$0xff]
    %v250 = vld [vmem:[#allocation5 + $0x1d8] sm:$0xff]
    %v251 = vld [vmem:[#allocation5 + $0x1e0] sm:$0xff]
    %v252 = vld [vmem:[#allocation5 + $0x1e8] sm:$0xff]
    %v253 = vld [vmem:[#allocation5 + $0x1f0] sm:$0xff]
    %v254 = vld [vmem:[#allocation5 + $0x1f8] sm:$0xff]
    %v255 = vld [vmem:[#allocation5 + $0x200] sm:$0xff]
    %v256 = vld [vmem:[#allocation5 + $0x208] sm:$0xff]
    %v257 = vld [vmem:[#allocation5 + $0x210] sm:$0xff]
    %v258 = vld [vmem:[#allocation5 + $0x218] sm:$0xff]
    %v259 = vld [vmem:[#allocation5 + $0x220] sm:$0xff]
    %v260 = vld [vmem:[#allocation5 + $0x228] sm:$0xff]
    %v261 = vld [vmem:[#allocation5 + $0x230] sm:$0xff]
    %v262 = vld [vmem:[#allocation5 + $0x238] sm:$0xff]
    %v263 = vld [vmem:[#allocation5 + $0x240] sm:$0xff]
    %v264 = vld [vmem:[#allocation5 + $0x248] sm:$0xff]
    %v265 = vld [vmem:[#allocation5 + $0x250] sm:$0xff]
    %v266 = vld [vmem:[#allocation5 + $0x258] sm:$0xff]
    %v267 = vld [vmem:[#allocation5 + $0x260] sm:$0xff]
    %v268 = vld [vmem:[#allocation5 + $0x268] sm:$0xff]
    %v269 = vld [vmem:[#allocation5 + $0x270] sm:$0xff]
    %v270 = vld [vmem:[#allocation5 + $0x278] sm:$0xff]
    %v271 = vld [vmem:[#allocation5 + $0x280] sm:$0xff]
    %v272 = vld [vmem:[#allocation5 + $0x288] sm:$0xff]
    %v273 = vld [vmem:[#allocation5 + $0x290] sm:$0xff]
    %v274 = vld [vmem:[#allocation5 + $0x298] sm:$0xff]
    %v275 = vld [vmem:[#allocation5 + $0x2a0] sm:$0xff]
    %v276 = vld [vmem:[#allocation5 + $0x2a8] sm:$0xff]
    %v277 = vld [vmem:[#allocation5 + $0x2b0] sm:$0xff]
    %v278 = vld [vmem:[#allocation5 + $0x2b8] sm:$0xff]
    %v279 = vld [vmem:[#allocation5 + $0x2c0] sm:$0xff]
    %v280 = vld [vmem:[#allocation5 + $0x2c8] sm:$0xff]
    %v281 = vld [vmem:[#allocation5 + $0x2d0] sm:$0xff]
    %v282 = vld [vmem:[#allocation5 + $0x2d8] sm:$0xff]
    %v283 = vld [vmem:[#allocation5 + $0x2e0] sm:$0xff]
    %v284 = vld [vmem:[#allocation5 + $0x2e8] sm:$0xff]
    %v285 = vld [vmem:[#allocation5 + $0x2f0] sm:$0xff]
    %v286 = vld [vmem:[#allocation5 + $0x2f8] sm:$0xff]
    %v287 = vld [vmem:[#allocation5 + $0x300] sm:$0xff]
    %v288 = vld [vmem:[#allocation5 + $0x308] sm:$0xff]
    %v289 = vld [vmem:[#allocation5 + $0x310] sm:$0xff]
    %v290 = vld [vmem:[#allocation5 + $0x318] sm:$0xff]
    %v291 = vld [vmem:[#allocation5 + $0x320] sm:$0xff]
    %v292 = vld [vmem:[#allocation5 + $0x328] sm:$0xff]
    %v293 = vld [vmem:[#allocation5 + $0x330] sm:$0xff]
    %v294 = vld [vmem:[#allocation5 + $0x338] sm:$0xff]
    %v295 = vld [vmem:[#allocation5 + $0x340] sm:$0xff]
    %v296 = vld [vmem:[#allocation5 + $0x348] sm:$0xff]
    %v297 = vld [vmem:[#allocation5 + $0x350] sm:$0xff]
    %v298 = vld [vmem:[#allocation5 + $0x358] sm:$0xff]
    %v299 = vld [vmem:[#allocation5 + $0x360] sm:$0xff]
    %v300 = vld [vmem:[#allocation5 + $0x368] sm:$0xff]
    %v301 = vld [vmem:[#allocation5 + $0x370] sm:$0xff]
    %v302 = vld [vmem:[#allocation5 + $0x378] sm:$0xff]
    %v303 = vld [vmem:[#allocation5 + $0x380] sm:$0xff]
    %v304 = vld [vmem:[#allocation5 + $0x388] sm:$0xff]
    %v305 = vld [vmem:[#allocation5 + $0x390] sm:$0xff]
    %v306 = vld [vmem:[#allocation5 + $0x398] sm:$0xff]
    %v307 = vld [vmem:[#allocation5 + $0x3a0] sm:$0xff]
    %v308 = vld [vmem:[#allocation5 + $0x3a8] sm:$0xff]
    %v309 = vld [vmem:[#allocation5 + $0x3b0] sm:$0xff]
    %v310 = vld [vmem:[#allocation5 + $0x3b8] sm:$0xff]
    %v311 = vld [vmem:[#allocation5 + $0x3c0] sm:$0xff]
    %v312 = vld [vmem:[#allocation5 + $0x3c8] sm:$0xff]
    %v313 = vld [vmem:[#allocation5 + $0x3d0] sm:$0xff]
    %v314 = vld [vmem:[#allocation5 + $0x3d8] sm:$0xff]
    %v315 = vld [vmem:[#allocation5 + $0x3e0] sm:$0xff]
    %v316 = vld [vmem:[#allocation5 + $0x3e8] sm:$0xff]
    %v317 = vld [vmem:[#allocation5 + $0x3f0] sm:$0xff]
    %v318 = vld [vmem:[#allocation5 + $0x3f8] sm:$0xff]
    %v319 = vld [vmem:[#allocation5 + $0x400] sm:$0xff]
    %v320 = vld [vmem:[#allocation5 + $0x408] sm:$0xff]
    %v321 = vld [vmem:[#allocation5 + $0x410] sm:$0xff]
    %v322 = vld [vmem:[#allocation5 + $0x418] sm:$0xff]
    %v323 = vld [vmem:[#allocation5 + $0x420] sm:$0xff]
    %v324 = vld [vmem:[#allocation5 + $0x428] sm:$0xff]
    %v325 = vld [vmem:[#allocation5 + $0x430] sm:$0xff]
    %v326 = vld [vmem:[#allocation5 + $0x438] sm:$0xff]
    %v327 = vld [vmem:[#allocation5 + $0x440] sm:$0xff]
    %v328 = vld [vmem:[#allocation5 + $0x448] sm:$0xff]
    %v329 = vld [vmem:[#allocation5 + $0x450] sm:$0xff]
    %v330 = vld [vmem:[#allocation5 + $0x458] sm:$0xff]
    %v331 = vld [vmem:[#allocation5 + $0x460] sm:$0xff]
    %v332 = vld [vmem:[#allocation5 + $0x468] sm:$0xff]
    %v333 = vld [vmem:[#allocation5 + $0x470] sm:$0xff]
    %v334 = vld [vmem:[#allocation5 + $0x478] sm:$0xff]
    %v335 = vmul.f32 %v47, %v191
    %v336 = vmul.f32 %v48, %v192
    %v337 = vmul.f32 %v49, %v193
    %v338 = vmul.f32 %v50, %v194
    %v339 = vmul.f32 %v51, %v195
    %v340 = vmul.f32 %v52, %v196
    %v341 = vmul.f32 %v53, %v197
    %v342 = vmul.f32 %v54, %v198
    %v343 = vmul.f32 %v55, %v199
    %v344 = vmul.f32 %v56, %v200
    %v345 = vmul.f32 %v57, %v201
    %v346 = vmul.f32 %v58, %v202
    %v347 = vmul.f32 %v59, %v203
    %v348 = vmul.f32 %v60, %v204
    %v349 = vmul.f32 %v61, %v205
    %v350 = vmul.f32 %v62, %v206
    %v351 = vmul.f32 %v63, %v207
    %v352 = vmul.f32 %v64, %v208
    %v353 = vmul.f32 %v65, %v209
    %v354 = vmul.f32 %v66, %v210
    %v355 = vmul.f32 %v67, %v211
    %v356 = vmul.f32 %v68, %v212
    %v357 = vmul.f32 %v69, %v213
    %v358 = vmul.f32 %v70, %v214
    %v359 = vmul.f32 %v71, %v215
    %v360 = vmul.f32 %v72, %v216
    %v361 = vmul.f32 %v73, %v217
    %v362 = vmul.f32 %v74, %v218
    %v363 = vmul.f32 %v75, %v219
    %v364 = vmul.f32 %v76, %v220
    %v365 = vmul.f32 %v77, %v221
    %v366 = vmul.f32 %v78, %v222
    %v367 = vmul.f32 %v79, %v223
    %v368 = vmul.f32 %v80, %v224
    %v369 = vmul.f32 %v81, %v225
    %v370 = vmul.f32 %v82, %v226
    %v371 = vmul.f32 %v83, %v227
    %v372 = vmul.f32 %v84, %v228
    %v373 = vmul.f32 %v85, %v229
    %v374 = vmul.f32 %v86, %v230
    %v375 = vmul.f32 %v87, %v231
    %v376 = vmul.f32 %v88, %v232
    %v377 = vmul.f32 %v89, %v233
    %v378 = vmul.f32 %v90, %v234
    %v379 = vmul.f32 %v91, %v235
    %v380 = vmul.f32 %v92, %v236
    %v381 = vmul.f32 %v93, %v237
    %v382 = vmul.f32 %v94, %v238
    %v383 = vmul.f32 %v95, %v239
    %v384 = vmul.f32 %v96, %v240
    %v385 = vmul.f32 %v97, %v241
    %v386 = vmul.f32 %v98, %v242
    %v387 = vmul.f32 %v99, %v243
    %v388 = vmul.f32 %v100, %v244
    %v389 = vmul.f32 %v101, %v245
    %v390 = vmul.f32 %v102, %v246
    %v391 = vmul.f32 %v103, %v247
    %v392 = vmul.f32 %v104, %v248
    %v393 = vmul.f32 %v105, %v249
    %v394 = vmul.f32 %v106, %v250
    %v395 = vmul.f32 %v107, %v251
    %v396 = vmul.f32 %v108, %v252
    %v397 = vmul.f32 %v109, %v253
    %v398 = vmul.f32 %v110, %v254
    %v399 = vmul.f32 %v111, %v255
    %v400 = vmul.f32 %v112, %v256
    %v401 = vmul.f32 %v113, %v257
    %v402 = vmul.f32 %v114, %v258
    %v403 = vmul.f32 %v115, %v259
    %v404 = vmul.f32 %v116, %v260
    %v405 = vmul.f32 %v117, %v261
    %v406 = vmul.f32 %v118, %v262
    %v407 = vmul.f32 %v119, %v263
    %v408 = vmul.f32 %v120, %v264
    %v409 = vmul.f32 %v121, %v265
    %v410 = vmul.f32 %v122, %v266
    %v411 = vmul.f32 %v123, %v267
    %v412 = vmul.f32 %v124, %v268
    %v413 = vmul.f32 %v125, %v269
    %v414 = vmul.f32 %v126, %v270
    %v415 = vmul.f32 %v127, %v271
    %v416 = vmul.f32 %v128, %v272
    %v417 = vmul.f32 %v129, %v273
    %v418 = vmul.f32 %v130, %v274
    %v419 = vmul.f32 %v131, %v275
    %v420 = vmul.f32 %v132, %v276
    %v421 = vmul.f32 %v133, %v277
    %v422 = vmul.f32 %v134, %v278
    %v423 = vmul.f32 %v135, %v279
    %v424 = vmul.f32 %v136, %v280
    %v425 = vmul.f32 %v137, %v281
    %v426 = vmul.f32 %v138, %v282
    %v427 = vmul.f32 %v139, %v283
    %v428 = vmul.f32 %v140, %v284
    %v429 = vmul.f32 %v141, %v285
    %v430 = vmul.f32 %v142, %v286
    %v431 = vmul.f32 %v143, %v287
    %v432 = vmul.f32 %v144, %v288
    %v433 = vmul.f32 %v145, %v289
    %v434 = vmul.f32 %v146, %v290
    %v435 = vmul.f32 %v147, %v291
    %v436 = vmul.f32 %v148, %v292
    %v437 = vmul.f32 %v149, %v293
    %v438 = vmul.f32 %v150, %v294
    %v439 = vmul.f32 %v151, %v295
    %v440 = vmul.f32 %v152, %v296
    %v441 = vmul.f32 %v153, %v297
    %v442 = vmul.f32 %v154, %v298
    %v443 = vmul.f32 %v155, %v299
    %v444 = vmul.f32 %v156, %v300
    %v445 = vmul.f32 %v157, %v301
    %v446 = vmul.f32 %v158, %v302
    %v447 = vmul.f32 %v159, %v303
    %v448 = vmul.f32 %v160, %v304
    %v449 = vmul.f32 %v161, %v305
    %v450 = vmul.f32 %v162, %v306
    %v451 = vmul.f32 %v163, %v307
    %v452 = vmul.f32 %v164, %v308
    %v453 = vmul.f32 %v165, %v309
    %v454 = vmul.f32 %v166, %v310
    %v455 = vmul.f32 %v167, %v311
    %v456 = vmul.f32 %v168, %v312
    %v457 = vmul.f32 %v169, %v313
    %v458 = vmul.f32 %v170, %v314
    %v459 = vmul.f32 %v171, %v315
    %v460 = vmul.f32 %v172, %v316
    %v461 = vmul.f32 %v173, %v317
    %v462 = vmul.f32 %v174, %v318
    %v463 = vmul.f32 %v175, %v319
    %v464 = vmul.f32 %v176, %v320
    %v465 = vmul.f32 %v177, %v321
    %v466 = vmul.f32 %v178, %v322
    %v467 = vmul.f32 %v179, %v323
    %v468 = vmul.f32 %v180, %v324
    %v469 = vmul.f32 %v181, %v325
    %v470 = vmul.f32 %v182, %v326
    %v471 = vmul.f32 %v183, %v327
    %v472 = vmul.f32 %v184, %v328
    %v473 = vmul.f32 %v185, %v329
    %v474 = vmul.f32 %v186, %v330
    %v475 = vmul.f32 %v187, %v331
    %v476 = vmul.f32 %v188, %v332
    %v477 = vmul.f32 %v189, %v333
    %v478 = vmul.f32 %v190, %v334
    %v479 = vld [vmem:[#allocation2] sm:$0xff]
    %v480 = vld [vmem:[#allocation2 + $0x8] sm:$0xff]
    %v481 = vld [vmem:[#allocation2 + $0x10] sm:$0xff]
    %v482 = vld [vmem:[#allocation2 + $0x18] sm:$0xff]
    %v483 = vadd.f32 %v335, %v336
    %v484 = vadd.f32 %v483, %v337
    %v485 = vadd.f32 %v484, %v338
    %v486 = vadd.f32 %v485, %v339
    %v487 = vadd.f32 %v486, %v340
    %v488 = vadd.f32 %v487, %v341
    %v489 = vadd.f32 %v488, %v342
    %v490 = vadd.f32 %v489, %v343
    %v491 = vadd.f32 %v490, %v344
    %v492 = vadd.f32 %v491, %v345
    %v493 = vadd.f32 %v492, %v346
    %v494 = vadd.f32 %v493, %v347
    %v495 = vadd.f32 %v494, %v348
    %v496 = vadd.f32 %v495, %v349
    %v497 = vadd.f32 %v496, %v350
    %v498 = vadd.f32 %v497, %v351
    %v499 = vadd.f32 %v498, %v352
    %v500 = vadd.f32 %v499, %v353
    %v501 = vadd.f32 %v500, %v354
    %v502 = vadd.f32 %v501, %v355
    %v503 = vadd.f32 %v502, %v356
    %v504 = vadd.f32 %v503, %v357
    %v505 = vadd.f32 %v504, %v358
    %v506 = vadd.f32 %v505, %v359
    %v507 = vadd.f32 %v506, %v360
    %v508 = vadd.f32 %v507, %v361
    %v509 = vadd.f32 %v508, %v362
    %v510 = vadd.f32 %v509, %v363
    %v511 = vadd.f32 %v510, %v364
    %v512 = vadd.f32 %v511, %v365
    %v513 = vadd.f32 %v512, %v366
    %v514 = vadd.f32 %v513, %v367
    %v515 = vadd.f32 %v514, %v368
    %v516 = vadd.f32 %v515, %v369
    %v517 = vadd.f32 %v516, %v370
    %v518 = vadd.f32 %v371, %v372
    %v519 = vadd.f32 %v518, %v373
    %v520 = vadd.f32 %v519, %v374
    %v521 = vadd.f32 %v520, %v375
    %v522 = vadd.f32 %v521, %v376
    %v523 = vadd.f32 %v522, %v377
    %v524 = vadd.f32 %v523, %v378
    %v525 = vadd.f32 %v524, %v379
    %v526 = vadd.f32 %v525, %v380
    %v527 = vadd.f32 %v526, %v381
    %v528 = vadd.f32 %v527, %v382
    %v529 = vadd.f32 %v528, %v383
    %v530 = vadd.f32 %v529, %v384
    %v531 = vadd.f32 %v530, %v385
    %v532 = vadd.f32 %v531, %v386
    %v533 = vadd.f32 %v532, %v387
    %v534 = vadd.f32 %v533, %v388
    %v535 = vadd.f32 %v534, %v389
    %v536 = vadd.f32 %v535, %v390
    %v537 = vadd.f32 %v536, %v391
    %v538 = vadd.f32 %v537, %v392
    %v539 = vadd.f32 %v538, %v393
    %v540 = vadd.f32 %v539, %v394
    %v541 = vadd.f32 %v540, %v395
    %v542 = vadd.f32 %v541, %v396
    %v543 = vadd.f32 %v542, %v397
    %v544 = vadd.f32 %v543, %v398
    %v545 = vadd.f32 %v544, %v399
    %v546 = vadd.f32 %v545, %v400
    %v547 = vadd.f32 %v546, %v401
    %v548 = vadd.f32 %v547, %v402
    %v549 = vadd.f32 %v548, %v403
    %v550 = vadd.f32 %v549, %v404
    %v551 = vadd.f32 %v550, %v405
    %v552 = vadd.f32 %v551, %v406
    %v553 = vadd.f32 %v407, %v408
    %v554 = vadd.f32 %v553, %v409
    %v555 = vadd.f32 %v554, %v410
    %v556 = vadd.f32 %v555, %v411
    %v557 = vadd.f32 %v556, %v412
    %v558 = vadd.f32 %v557, %v413
    %v559 = vadd.f32 %v558, %v414
    %v560 = vadd.f32 %v559, %v415
    %v561 = vadd.f32 %v560, %v416
    %v562 = vadd.f32 %v561, %v417
    %v563 = vadd.f32 %v562, %v418
    %v564 = vadd.f32 %v563, %v419
    %v565 = vadd.f32 %v564, %v420
    %v566 = vadd.f32 %v565, %v421
    %v567 = vadd.f32 %v566, %v422
    %v568 = vadd.f32 %v567, %v423
    %v569 = vadd.f32 %v568, %v424
    %v570 = vadd.f32 %v569, %v425
    %v571 = vadd.f32 %v570, %v426
    %v572 = vadd.f32 %v571, %v427
    %v573 = vadd.f32 %v572, %v428
    %v574 = vadd.f32 %v573, %v429
    %v575 = vadd.f32 %v574, %v430
    %v576 = vadd.f32 %v575, %v431
    %v577 = vadd.f32 %v576, %v432
    %v578 = vadd.f32 %v577, %v433
    %v579 = vadd.f32 %v578, %v434
    %v580 = vadd.f32 %v579, %v435
    %v581 = vadd.f32 %v580, %v436
    %v582 = vadd.f32 %v581, %v437
    %v583 = vadd.f32 %v582, %v438
    %v584 = vadd.f32 %v583, %v439
    %v585 = vadd.f32 %v584, %v440
    %v586 = vadd.f32 %v585, %v441
    %v587 = vadd.f32 %v586, %v442
    %v588 = vadd.f32 %v443, %v444
    %v589 = vadd.f32 %v588, %v445
    %v590 = vadd.f32 %v589, %v446
    %v591 = vadd.f32 %v590, %v447
    %v592 = vadd.f32 %v591, %v448
    %v593 = vadd.f32 %v592, %v449
    %v594 = vadd.f32 %v593, %v450
    %v595 = vadd.f32 %v594, %v451
    %v596 = vadd.f32 %v595, %v452
    %v597 = vadd.f32 %v596, %v453
    %v598 = vadd.f32 %v597, %v454
    %v599 = vadd.f32 %v598, %v455
    %v600 = vadd.f32 %v599, %v456
    %v601 = vadd.f32 %v600, %v457
    %v602 = vadd.f32 %v601, %v458
    %v603 = vadd.f32 %v602, %v459
    %v604 = vadd.f32 %v603, %v460
    %v605 = vadd.f32 %v604, %v461
    %v606 = vadd.f32 %v605, %v462
    %v607 = vadd.f32 %v606, %v463
    %v608 = vadd.f32 %v607, %v464
    %v609 = vadd.f32 %v608, %v465
    %v610 = vadd.f32 %v609, %v466
    %v611 = vadd.f32 %v610, %v467
    %v612 = vadd.f32 %v611, %v468
    %v613 = vadd.f32 %v612, %v469
    %v614 = vadd.f32 %v613, %v470
    %v615 = vadd.f32 %v614, %v471
    %v616 = vadd.f32 %v615, %v472
    %v617 = vadd.f32 %v616, %v473
    %v618 = vadd.f32 %v617, %v474
    %v619 = vadd.f32 %v618, %v475
    %v620 = vadd.f32 %v619, %v476
    %v621 = vadd.f32 %v620, %v477
    %v622 = vadd.f32 %v621, %v478
    %v623 = vadd.f32 %v479, %v517
    %v624 = vadd.f32 %v480, %v552
    %v625 = vadd.f32 %v481, %v587
    %v626 = vadd.f32 %v482, %v622
    %627 = vst [vmem:[#allocation2] sm:$0xff] %v623
    %628 = vst [vmem:[#allocation2 + $0x8] sm:$0xff] %v624
    %629 = vst [vmem:[#allocation2 + $0x10] sm:$0xff] %v625
    %630 = vst [vmem:[#allocation2 + $0x18] sm:$0xff] %v626
    // Predicated region
    $region22: #{tpu_custom_call.1} parent=1 // pred_check
      %p631 = pneg %p39
    $region23: #{tpu_custom_call.1} parent=1 // pred_check_branch
      %633 = sbr.rel (%p631) target = $region25
    $region24: #{tpu_custom_call.1} parent=1 // pred_region
      %v634 = vld [vmem:[#allocation2] sm:$0xff]
      %v635 = vld [vmem:[#allocation2 + $0x8] sm:$0xff]
      %v636 = vld [vmem:[#allocation2 + $0x10] sm:$0xff]
      %v637 = vld [vmem:[#allocation2 + $0x18] sm:$0xff]
      %v638 = vrot.slane %v634, 4
      %v639 = vadd.f32 %v634, %v638
      %v640 = vrot.slane %v639, 2
      %v641 = vadd.f32 %v639, %v640
      %v642 = vrot.slane %v641, 1
      %v643 = vadd.f32 %v641, %v642
      %v644 = vrot.slane %v635, 4
      %v645 = vadd.f32 %v635, %v644
      %v646 = vrot.slane %v645, 2
      %v647 = vadd.f32 %v645, %v646
      %v648 = vrot.slane %v647, 1
      %v649 = vadd.f32 %v647, %v648
      %v650 = vrot.slane %v636, 4
      %v651 = vadd.f32 %v636, %v650
      %v652 = vrot.slane %v651, 2
      %v653 = vadd.f32 %v651, %v652
      %v654 = vrot.slane %v653, 1
      %v655 = vadd.f32 %v653, %v654
      %v656 = vrot.slane %v637, 4
      %v657 = vadd.f32 %v637, %v656
      %v658 = vrot.slane %v657, 2
      %v659 = vadd.f32 %v657, %v658
      %v660 = vrot.slane %v659, 1
      %v661 = vadd.f32 %v659, %v660
      %vm666 = vcmask 1041409
      %v667 = vsel %vm666, %v649, %v643
      %vm668 = vcmask 1042434
      %v669 = vsel %vm668, %v655, %v667
      %vm670 = vcmask 1043459
      %v671 = vsel %vm670, %v661, %v669
      %vm673 = vcmask 1043456
      %v674 = vsel %vm673, %v671, 0.0
      %675 = vadd.xlane.f32.xlu0 %v674
      %v676 = vpop.xlane.xlu0 %675
      %v677 = vmul.f32 %v676, -0.0026041667
      %vm678 = vcmask 3072
      %679 = vst.msk [vmem:[%s2] sm:$0xf] %vm678, %v677
    $region25: #{tpu_custom_call.1} parent=1 // pred_fallthru
      _
    // Predicated region
    $region26: #{tpu_custom_call.1} parent=1 // pred_check
      _
    $region27: #{tpu_custom_call.1} parent=1 // pred_check_branch
      %681 = sbr.rel (0) target = $region29
    $region28: #{tpu_custom_call.1} parent=1 // pred_region
      _
    $region29: #{tpu_custom_call.1} parent=1 // pred_fallthru
      _
    // Predicated region
    $region30: #{tpu_custom_call.1} parent=1 // pred_check
      _
    $region31: #{tpu_custom_call.1} parent=1 // pred_check_branch
      %683 = sbr.rel (0) target = $region33
    $region32: #{tpu_custom_call.1} parent=1 // pred_region
      _
    $region33: #{tpu_custom_call.1} parent=1 // pred_fallthru
      _
    %684 = vsyncpa [#allocation4], 1
    %685 = vsyncpa [#allocation6], 1

</llo_original>
